<compile_context>
chip_gen: v5e
topology: v5e:2x2
jax: 0.10.0
libtpu: 0.0.40
codegen_flags: <defaults>
</compile_context>

<pallas_src>
import jax
import jax.numpy as jnp
from jax.experimental import pallas as pl
from jax.experimental.pallas import tpu as pltpu

_VMEM = pl.BlockSpec(memory_space=pltpu.MemorySpace.VMEM)
_N_CLASSES_PAD = 128  # lane-dense classifier output


# ---------------------------------------------------------------------------
# Kernels
# ---------------------------------------------------------------------------

def _embed_gate_kernel(emb_ref, we_ref, be_ref, p_ref):
    """pooled = sum_seq( (emb @ We + be) * emb )   per batch row."""
    tb, s, d = emb_ref.shape
    x = emb_ref[...].reshape(tb * s, d)                     # bf16
    y = jnp.dot(x, we_ref[...], preferred_element_type=jnp.float32)
    w = (y + be_ref[...]) * x.astype(jnp.float32)           # f32 elementwise
    p_ref[...] = jnp.sum(w.reshape(tb, s, d), axis=1, keepdims=True)


def _cnn_block_kernel(x_ref, p_ref, w0_ref, w1_ref, w2_ref, bc_ref,
                      wg_ref, bg_ref, out_ref, pout_ref):
    """out   = relu(conv1d_k3(x))                  (unfold done in-kernel)
       p_out = p_in + sum_seq( (out @ Wg + bg) * out )"""
    tb, s, d = x_ref.shape
    x = x_ref[...]                                           # bf16 [tb, S, D]
    zrow = jnp.zeros((tb, 1, d), x.dtype)
    x_prev = jnp.concatenate([zrow, x[:, :s - 1, :]], axis=1).reshape(tb * s, d)
    x_next = jnp.concatenate([x[:, 1:, :], zrow], axis=1).reshape(tb * s, d)
    xf = x.reshape(tb * s, d)

    conv = (jnp.dot(x_prev, w0_ref[...], preferred_element_type=jnp.float32)
            + jnp.dot(xf, w1_ref[...], preferred_element_type=jnp.float32)
            + jnp.dot(x_next, w2_ref[...], preferred_element_type=jnp.float32)
            + bc_ref[...])
    out = jnp.maximum(conv, 0.0)                             # f32
    out_lp = out.astype(out_ref.dtype)                       # bf16 for MXU/store

    gate = jnp.dot(out_lp, wg_ref[...], preferred_element_type=jnp.float32)
    w = (gate + bg_ref[...]) * out                           # f32 elementwise

    out_ref[...] = out_lp.reshape(tb, s, d)
    pout_ref[...] = p_ref[...] + jnp.sum(w.reshape(tb, s, d), axis=1,
                                         keepdims=True)


def _classifier_kernel(pc_ref, w_ref, b_ref, o_ref):
    """logits = concat(pooled1, pooled2) @ Wcls + b   (lane-padded to 128)."""
    y = jnp.dot(pc_ref[...], w_ref[...], preferred_element_type=jnp.float32)
    o_ref[...] = y + b_ref[...]


# ---------------------------------------------------------------------------
# pallas_call wrappers
# ---------------------------------------------------------------------------

def _choose_tile_b(total_b, s, d, itemsize=2, max_rows=1024,
                   vmem_budget=4 << 20):
    """Largest divisor of total_b whose [tile_b, S, D] block stays small."""
    best = 1
    for t in range(1, total_b + 1):
        if total_b % t:
            continue
        if t * s > max_rows:
            continue
        if t * s * d * itemsize > vmem_budget:
            continue
        best = t
    return best


def pallas_embed_gate(emb, we, be):
    total_b, s, d = emb.shape
    tile_b = _choose_tile_b(total_b, s, d)
    grid = (total_b // tile_b,)
    return pl.pallas_call(
        _embed_gate_kernel,
        out_shape=jax.ShapeDtypeStruct((total_b, 1, d), jnp.float32),
        grid=grid,
        in_specs=[
            pl.BlockSpec((tile_b, s, d), lambda i: (i, 0, 0)),
            pl.BlockSpec((d, d), lambda i: (0, 0)),
            pl.BlockSpec((1, d), lambda i: (0, 0)),
        ],
        out_specs=pl.BlockSpec((tile_b, 1, d), lambda i: (i, 0, 0)),
        compiler_params=pltpu.CompilerParams(
            dimension_semantics=("parallel",)),
    )(emb, we, be)


def pallas_cnn_block(x, p, w0, w1, w2, bc, wg, bg):
    total_b, s, d = x.shape
    tile_b = _choose_tile_b(total_b, s, d)
    grid = (total_b // tile_b,)
    return pl.pallas_call(
        _cnn_block_kernel,
        out_shape=(jax.ShapeDtypeStruct((total_b, s, d), x.dtype),
                   jax.ShapeDtypeStruct((total_b, 1, d), jnp.float32)),
        grid=grid,
        in_specs=[
            pl.BlockSpec((tile_b, s, d), lambda i: (i, 0, 0)),
            pl.BlockSpec((tile_b, 1, d), lambda i: (i, 0, 0)),
            pl.BlockSpec((d, d), lambda i: (0, 0)),
            pl.BlockSpec((d, d), lambda i: (0, 0)),
            pl.BlockSpec((d, d), lambda i: (0, 0)),
            pl.BlockSpec((1, d), lambda i: (0, 0)),
            pl.BlockSpec((d, d), lambda i: (0, 0)),
            pl.BlockSpec((1, d), lambda i: (0, 0)),
        ],
        out_specs=(pl.BlockSpec((tile_b, s, d), lambda i: (i, 0, 0)),
                   pl.BlockSpec((tile_b, 1, d), lambda i: (i, 0, 0))),
        compiler_params=pltpu.CompilerParams(
            dimension_semantics=("parallel",)),
    )(x, p, w0, w1, w2, bc, wg, bg)


def pallas_classifier(pc, w, b):
    batch = pc.shape[0]
    n_pad = w.shape[1]
    return pl.pallas_call(
        _classifier_kernel,
        out_shape=jax.ShapeDtypeStruct((batch, n_pad), jnp.float32),
        in_specs=[_VMEM, _VMEM, _VMEM],
        out_specs=_VMEM,
    )(pc, w, b)


# ---------------------------------------------------------------------------
# Parameters & forward pass
# ---------------------------------------------------------------------------

def init_params(key, vocab, d, n_layers, n_classes):
    ks = jax.random.split(key, 5 + 6 * n_layers)

    def uniform(k, shape, fan_in):
        lim = 1.0 / jnp.sqrt(jnp.float32(fan_in))
        return jax.random.uniform(k, shape, jnp.float32, -lim, lim)

    cls_w = uniform(ks[3], (2 * d, n_classes), 2 * d)
    cls_b = uniform(ks[4], (1, n_classes), 2 * d)
    pad_c = _N_CLASSES_PAD - n_classes
    params = {
        "n_classes": n_classes,
        "emb": (jax.random.normal(ks[0], (vocab, d), jnp.float32)
                * 0.02).astype(jnp.bfloat16),
        "we_w": uniform(ks[1], (d, d), d).astype(jnp.bfloat16),
        "we_b": uniform(ks[2], (1, d), d),                       # f32
        "cls_w": jnp.pad(cls_w, ((0, 0), (0, pad_c))).astype(jnp.bfloat16),
        "cls_b": jnp.pad(cls_b, ((0, 0), (0, pad_c))),           # f32
        "layers": [],
    }
    for i in range(n_layers):
        k0, k1, k2, k3, k4, k5 = ks[5 + 6 * i: 11 + 6 * i]
        params["layers"].append({
            "w0": uniform(k0, (d, d), 3 * d).astype(jnp.bfloat16),
            "w1": uniform(k1, (d, d), 3 * d).astype(jnp.bfloat16),
            "w2": uniform(k2, (d, d), 3 * d).astype(jnp.bfloat16),
            "conv_b": uniform(k3, (1, d), 3 * d),                # f32
            "gate_w": uniform(k4, (d, d), d).astype(jnp.bfloat16),
            "gate_b": uniform(k5, (1, d), d),                    # f32
        })
    return params


def cnn_forward(params, X1, X2):
    b, s = X1.shape
    d = params["emb"].shape[1]

    # Fuse the two towers along the batch axis (weights are shared).
    ids = jnp.concatenate([X1, X2], axis=0)                  # [2B, S]
    emb = jnp.take(params["emb"], ids, axis=0)               # [2B, S, D] bf16

    # weight_embed gate + seq-sum pooling (pooled accumulator only)
    p = pallas_embed_gate(emb, params["we_w"], params["we_b"])  # [2B,1,D] f32

    # CNN layers: conv + relu + gate + residual pooled accumulation, fused
    x = emb
    for lp in params["layers"]:
        x, p = pallas_cnn_block(x, p, lp["w0"], lp["w1"], lp["w2"],
                                lp["conv_b"], lp["gate_w"], lp["gate_b"])

    # classifier on concat(pooled1, pooled2); lane-padded output, slice after
    p1 = p[:b, 0, :]
    p2 = p[b:, 0, :]
    pc = jnp.concatenate([p1, p2], axis=1).astype(jnp.bfloat16)  # [B, 2D]
    logits_pad = pallas_classifier(pc, params["cls_w"], params["cls_b"])
    return logits_pad[:, : params["n_classes"]]


# ---------------------------------------------------------------------------

if __name__ == "__main__":
    BATCH, SEQ, D, VOCAB, N_LAYERS, N_CLASSES = 2, 8, 32, 50, 2, 2

    key = jax.random.PRNGKey(0)
    k_p, k_x1, k_x2 = jax.random.split(key, 3)

    params = init_params(k_p, VOCAB, D, N_LAYERS, N_CLASSES)
    X1 = jax.random.randint(k_x1, (BATCH, SEQ), 0, VOCAB, dtype=jnp.int32)
    X2 = jax.random.randint(k_x2, (BATCH, SEQ), 0, VOCAB, dtype=jnp.int32)

    logits = cnn_forward(params, X1, X2)
    jax.block_until_ready(logits)
    assert logits.shape == (BATCH, N_CLASSES)
    print("KERNEL_OK")
</pallas_src>

<mosaic_0001>
module attributes {stable_mosaic.version = 11 : i64} {
  func.func @_embed_gate_kernel(%arg0: i32, %arg1: memref<4x8x32xbf16, #tpu.memory_space<vmem>>, %arg2: memref<32x32xbf16, #tpu.memory_space<vmem>>, %arg3: memref<1x32xf32, #tpu.memory_space<vmem>>, %arg4: memref<4x1x32xf32, #tpu.memory_space<vmem>>) attributes {dimension_semantics = [#tpu.dimension_semantics<parallel>], iteration_bounds = array<i64: 1>, scalar_prefetch = 0 : i64, scratch_operands = 0 : i64, tpu.core_type = #tpu.core_type<tc>, window_params = [{transform_indices = @transform_0, window_bounds = array<i64: 4, 8, 32>}, {pipeline_mode = #tpu.pipeline_mode<synchronous>, transform_indices = @transform_1, window_bounds = array<i64: 32, 32>}, {pipeline_mode = #tpu.pipeline_mode<synchronous>, transform_indices = @transform_2, window_bounds = array<i64: 1, 32>}, {transform_indices = @transform_3, window_bounds = array<i64: 4, 1, 32>}]} {
    %c0 = arith.constant 0 : index
    %c0_0 = arith.constant 0 : index
    %c0_1 = arith.constant 0 : index
    %0 = vector.load %arg1[%c0, %c0_0, %c0_1] : memref<4x8x32xbf16, #tpu.memory_space<vmem>>, vector<4x8x32xbf16>
    %1 = vector.shape_cast %0 : vector<4x8x32xbf16> to vector<32x32xbf16>
    %c0_2 = arith.constant 0 : index
    %c0_3 = arith.constant 0 : index
    %2 = vector.load %arg2[%c0_2, %c0_3] : memref<32x32xbf16, #tpu.memory_space<vmem>>, vector<32x32xbf16>
    %cst = arith.constant dense<0.000000e+00> : vector<32x32xf32>
    %3 = tpu.matmul %1, %2, %cst {dimension_numbers = #tpu.dot_dimension_numbers<[1], [0], [0], [1], [0, 0, 1, 1], [], []>} : vector<32x32xbf16>, vector<32x32xbf16>, vector<32x32xf32> -> vector<32x32xf32>
    %c0_4 = arith.constant 0 : index
    %c0_5 = arith.constant 0 : index
    %4 = vector.load %arg3[%c0_4, %c0_5] : memref<1x32xf32, #tpu.memory_space<vmem>>, vector<1x32xf32>
    %5 = vector.broadcast %4 : vector<1x32xf32> to vector<32x32xf32>
    %6 = arith.addf %3, %5 : vector<32x32xf32>
    %7 = arith.extf %1 : vector<32x32xbf16> to vector<32x32xf32>
    %8 = arith.mulf %6, %7 : vector<32x32xf32>
    %9 = vector.shape_cast %8 : vector<32x32xf32> to vector<4x8x32xf32>
    %cst_6 = arith.constant dense<0.000000e+00> : vector<4x32xf32>
    %10 = vector.multi_reduction <add>, %9, %cst_6 [1] : vector<4x8x32xf32> to vector<4x32xf32>
    %11 = vector.shape_cast %10 : vector<4x32xf32> to vector<4x1x32xf32>
    %c0_7 = arith.constant 0 : index
    %c0_8 = arith.constant 0 : index
    %c0_9 = arith.constant 0 : index
    %12 = vector.load %arg4[%c0_7, %c0_8, %c0_9] : memref<4x1x32xf32, #tpu.memory_space<vmem>>, vector<4x1x32xf32>
    tpu.vector_store %arg4[%c0_7, %c0_8, %c0_9], %11 {strides = array<i32>} : memref<4x1x32xf32, #tpu.memory_space<vmem>>, vector<4x1x32xf32>,
    return
  }
  func.func @transform_0(%arg0: i32) -> (i32, i32, i32) {
    %c0_i32 = arith.constant 0 : i32
    %c0_i32_0 = arith.constant 0 : i32
    %c0_i32_1 = arith.constant 0 : i32
    return %arg0, %c0_i32, %c0_i32_0 : i32, i32, i32
  }
  func.func @transform_1(%arg0: i32) -> (i32, i32) {
    %c0_i32 = arith.constant 0 : i32
    %c0_i32_0 = arith.constant 0 : i32
    %c0_i32_1 = arith.constant 0 : i32
    return %c0_i32, %c0_i32_0 : i32, i32
  }
  func.func @transform_2(%arg0: i32) -> (i32, i32) {
    %c0_i32 = arith.constant 0 : i32
    %c0_i32_0 = arith.constant 0 : i32
    %c0_i32_1 = arith.constant 0 : i32
    return %c0_i32, %c0_i32_0 : i32, i32
  }
  func.func @transform_3(%arg0: i32) -> (i32, i32, i32) {
    %c0_i32 = arith.constant 0 : i32
    %c0_i32_0 = arith.constant 0 : i32
    %c0_i32_1 = arith.constant 0 : i32
    return %arg0, %c0_i32, %c0_i32_0 : i32, i32, i32
  }
}

</mosaic_0001>

<llo_original>
// kernel: tpu_custom_call.1
$region0: #{tpu_custom_call.1}
  #allocation0 [shape = 'u32[]', space=smem, size = 0x4, offset = 0x4, fixed_abs, tag = 'smem constant byte address 0x4 - core index']
  #allocation1 [shape = 'u32[72,128]{1,0:T(1,128)}', space=vmem, size = 0x9000, scoped, tag = 'internal scratch']
  %s0 = inlined_call_operand.hbm [shape: bf16[4,8,32], index: 0, kind: input, shape index: {}]
  %s1 = inlined_call_operand.hbm [shape: bf16[32,32], index: 1, kind: input, shape index: {}]
  %s2 = inlined_call_operand.vmem [shape: f32[1,32], index: 2, kind: input, shape index: {}]
  %s3 = inlined_call_operand.hbm [shape: f32[4,1,32], index: 3, kind: output, shape index: {}]
  %s4 = sld [smem:[#allocation0]]
  $region30: #{tpu_custom_call.1} parent=0
    _
  %s6 = ssub.s32 1, %s4
  %s7 = scalar_select 0, %s6, %s4
  $region1: #{tpu_custom_call.1} parent=0
    #allocation2 [shape = 'u8[8192]{0}', space=vmem, size = 0x2000, scoped, tag = 'input window, operand 0, single buffered']
    #allocation3 [shape = 's32[1]{0}', space=sflag, size = 0x4, scoped, tag = 'scoped memory for tpu_custom_call.1']
    #allocation4 [shape = 's32[1]{0}', space=sflag, size = 0x4, scoped, tag = 'scoped memory for tpu_custom_call.1']
    #allocation5 [shape = 'u8[8192]{0}', space=vmem, size = 0x2000, scoped, tag = 'input window, operand 1, single buffered']
    #allocation6 [shape = 's32[1]{0}', space=sflag, size = 0x4, scoped, tag = 'scoped memory for tpu_custom_call.1']
    #allocation7 [shape = 'u8[2048]{0}', space=vmem, size = 0x800, scoped, tag = 'output window, operand 0, single buffered']
    %8 = vsyncpa [#allocation3], 0
    %9 = vsyncpa [#allocation6], 0
    %10 = vsyncpa [#allocation4], 0
    // Predicated region
    $region2: #{tpu_custom_call.1} parent=1 // pred_check
      _
    $region3: #{tpu_custom_call.1} parent=1 // pred_check_branch
      %12 = sbr.rel (0) target = $region5
    $region4: #{tpu_custom_call.1} parent=1 // pred_region
      %14 = vsyncadd [#allocation3], 0
      %s15 = sshll.u32 %s0, 4
      %s16 = int_to_ptr.hbm [resolvable:$true] %s15
      %s17 = sshll.u32 [#allocation2], 4
      %s18 = int_to_ptr.vmem [resolvable:$true] %s17
      %23 = dma.hbm_to_vmem [thread:$0]  %s16, 256, %s18, [#allocation3], 64, 64, 4
    $region5: #{tpu_custom_call.1} parent=1 // pred_fallthru
      _
    // Predicated region
    $region6: #{tpu_custom_call.1} parent=1 // pred_check
      _
    $region7: #{tpu_custom_call.1} parent=1 // pred_check_branch
      %25 = sbr.rel (0) target = $region9
    $region8: #{tpu_custom_call.1} parent=1 // pred_region
      %27 = vsyncadd [#allocation6], 0
      %s28 = sshll.u32 %s1, 4
      %s29 = int_to_ptr.hbm [resolvable:$true] %s28
      %s30 = sshll.u32 [#allocation5], 4
      %s31 = int_to_ptr.vmem [resolvable:$true] %s30
      %36 = dma.hbm_to_vmem [thread:$0]  %s29, 256, %s31, [#allocation6], 64, 64, 4
    $region9: #{tpu_custom_call.1} parent=1 // pred_fallthru
      _
    // Predicated region
    $region10: #{tpu_custom_call.1} parent=1 // pred_check
      _
    $region11: #{tpu_custom_call.1} parent=1 // pred_check_branch
      %38 = sbr.rel (0) target = $region13
    $region12: #{tpu_custom_call.1} parent=1 // pred_region
      _
    $region13: #{tpu_custom_call.1} parent=1 // pred_fallthru
      _
    // Predicated region
    $region14: #{tpu_custom_call.1} parent=1 // pred_check
      _
    $region15: #{tpu_custom_call.1} parent=1 // pred_check_branch
      %40 = sbr.rel (0) target = $region17
    $region16: #{tpu_custom_call.1} parent=1 // pred_region
      %42 = dma.done [#allocation3], 256
    $region17: #{tpu_custom_call.1} parent=1 // pred_fallthru
      _
    // Predicated region
    $region18: #{tpu_custom_call.1} parent=1 // pred_check
      _
    $region19: #{tpu_custom_call.1} parent=1 // pred_check_branch
      %44 = sbr.rel (0) target = $region21
    $region20: #{tpu_custom_call.1} parent=1 // pred_region
      %46 = dma.done [#allocation6], 256
    $region21: #{tpu_custom_call.1} parent=1 // pred_fallthru
      _
    %v48 = vld [vmem:[#allocation2] sm:$0xf]
    %v49 = vld [vmem:[#allocation2 + $0x4] sm:$0xf]
    %v50 = vld [vmem:[#allocation2 + $0x8] sm:$0xf]
    %v51 = vld [vmem:[#allocation2 + $0xc] sm:$0xf]
    %v52 = vld [vmem:[#allocation5] sm:$0xf]
    %v53 = vld [vmem:[#allocation5 + $0x4] sm:$0xf]
    %v54 = vld [vmem:[#allocation5 + $0x8] sm:$0xf]
    %v55 = vld [vmem:[#allocation5 + $0xc] sm:$0xf]
    %v56 = vld [vmem:[%s2] sm:$0x1]
    %v58 = vperm.slane %v56, 0
    %v64 = vunpack.c.l.b16 %v48
    %v65 = vunpack.c.l.b16 %v49
    %v66 = vunpack.c.l.b16 %v50
    %v67 = vunpack.c.l.b16 %v51
    %v68 = vpack.c.b16 %v65, %v64
    %v69 = vpack.c.b16 %v67, %v66
    %v74 = vunpack.c.l.b16 %v52
    %v75 = vunpack.c.l.b16 %v53
    %v76 = vunpack.c.l.b16 %v54
    %v77 = vunpack.c.l.b16 %v55
    %v78 = vpack.c.b16 %v75, %v74
    %v79 = vpack.c.b16 %v77, %v76
    %vm82 = vcmask 261120
    %v84 = vsel %vm82, %v68, 0
    %v87 = vsel %vm82, %v69, 0
    %89 = vmatpush.bf16.msra.mxu0 0
    %90 = vmatpush.bf16.msra.mxu0 0
    %91 = vmatpush.bf16.msra.mxu0 0
    %92 = vmatpush.bf16.msra.mxu0 0
    %93 = vmatpush.bf16.msra.mxu0 0
    %94 = vmatpush.bf16.msra.mxu0 0
    %95 = vmatpush.bf16.msra.mxu0 %v79
    %96 = vmatpush.bf16.msra.mxu0 %v78
    %97 = vmatmul.bf16.gmra.mxu0 %v84
    %v98 = vpop.f32.mrf.mxu0
    %v99 = vadd.f32 %v58, %v98
    %v100 = vpop.f32.mrf.mxu0
    %v101 = vadd.f32 %v58, %v100
    %102 = vmatmul.bf16.gmra.mxu0 %v87
    %v103 = vpop.f32.mrf.mxu0
    %v104 = vadd.f32 %v58, %v103
    %v105 = vpop.f32.mrf.mxu0
    %v106 = vadd.f32 %v58, %v105
    %107 = vdwg.mxu0
    %v108 = vunpack.c.l.bf16 %v48
    %v109 = vunpack.c.l.bf16 %v49
    %v110 = vunpack.c.l.bf16 %v50
    %v111 = vunpack.c.l.bf16 %v51
    %v112 = vmul.f32 %v99, %v108
    %v113 = vmul.f32 %v101, %v109
    %v114 = vmul.f32 %v104, %v110
    %v115 = vmul.f32 %v106, %v111
    %v116 = vsel %vm82, %v112, 0.0
    %v117 = vrot.slane %v116, 4
    %v118 = vadd.f32 %v116, %v117
    %v119 = vrot.slane %v118, 2
    %v120 = vadd.f32 %v118, %v119
    %v121 = vrot.slane %v120, 1
    %v122 = vadd.f32 %v120, %v121
    %v123 = vsel %vm82, %v113, 0.0
    %v124 = vrot.slane %v123, 4
    %v125 = vadd.f32 %v123, %v124
    %v126 = vrot.slane %v125, 2
    %v127 = vadd.f32 %v125, %v126
    %v128 = vrot.slane %v127, 1
    %v129 = vadd.f32 %v127, %v128
    %v130 = vsel %vm82, %v114, 0.0
    %v131 = vrot.slane %v130, 4
    %v132 = vadd.f32 %v130, %v131
    %v133 = vrot.slane %v132, 2
    %v134 = vadd.f32 %v132, %v133
    %v135 = vrot.slane %v134, 1
    %v136 = vadd.f32 %v134, %v135
    %v137 = vsel %vm82, %v115, 0.0
    %v138 = vrot.slane %v137, 4
    %v139 = vadd.f32 %v137, %v138
    %v140 = vrot.slane %v139, 2
    %v141 = vadd.f32 %v139, %v140
    %v142 = vrot.slane %v141, 1
    %v143 = vadd.f32 %v141, %v142
    %vm144 = vcmask 253952
    %145 = vst.msk [vmem:[#allocation7] sm:$0x1] %vm144, %v122
    %146 = vst.msk [vmem:[#allocation7 + $0x1] sm:$0x1] %vm144, %v129
    %147 = vst.msk [vmem:[#allocation7 + $0x2] sm:$0x1] %vm144, %v136
    %148 = vst.msk [vmem:[#allocation7 + $0x3] sm:$0x1] %vm144, %v143
    // Predicated region
    $region22: #{tpu_custom_call.1} parent=1 // pred_check
      _
    $region23: #{tpu_custom_call.1} parent=1 // pred_check_branch
      %150 = sbr.rel (0) target = $region25
    $region24: #{tpu_custom_call.1} parent=1 // pred_region
      %152 = vsyncadd [#allocation4], 0
      %s153 = sshll.u32 [#allocation7], 4
      %s154 = int_to_ptr.vmem [resolvable:$true] %s153
      %s155 = sshll.u32 %s3, 4
      %s156 = int_to_ptr.hbm [resolvable:$true] %s155
      %161 = dma.vmem_to_hbm [thread:$0]  %s154, 64, %s156, [#allocation4], 16, 16, 1
    $region25: #{tpu_custom_call.1} parent=1 // pred_fallthru
      _
    // Predicated region
    $region26: #{tpu_custom_call.1} parent=1 // pred_check
      _
    $region27: #{tpu_custom_call.1} parent=1 // pred_check_branch
      %163 = sbr.rel (0) target = $region29
    $region28: #{tpu_custom_call.1} parent=1 // pred_region
      %165 = dma.done [#allocation4], 64
    $region29: #{tpu_custom_call.1} parent=1 // pred_fallthru
      _
    %166 = vsyncpa [#allocation3], 1
    %167 = vsyncpa [#allocation6], 1
    %168 = vsyncpa [#allocation4], 1

</llo_original>
